<compile_context>
chip_gen: v7x
topology: tpu7x:2x2x1
jax: 0.10.0
libtpu: 0.0.40
codegen_flags: <defaults>
</compile_context>

<pallas_src>
import functools
import math

import jax
import jax.numpy as jnp
from jax import lax
from jax.experimental import pallas as pl
from jax.experimental.pallas import tpu as pltpu


def _round_up(x, m):
    return ((x + m - 1) // m) * m


# ---------------------------------------------------------------------------
# Fused kernel: attention + K-way weight aggregation + implicit-im2col conv.
# ---------------------------------------------------------------------------
def _fused_dynconv_kernel(pooled_ref, fc1_ref, fc2t_ref, b2_ref, w_ref, x_ref,
                          o_ref, agg_ref, col_ref, *, kk, dil, wp, cinp, tw,
                          inv_temp):
    # pooled_ref: (1, 1, C_in)          f32   per-batch channel means
    # fc1_ref   : (hidden, C_in)        f32
    # fc2t_ref  : (hidden, K)           f32   (fc2 weight transposed)
    # b2_ref    : (1, K)                f32
    # w_ref     : (K, cot, Kc)          bf16  candidate kernels, Kc = kk*kk*cinp
    # x_ref     : (1, 1, cinp, tlen)    bf16  per-(batch,row-tile) input window
    # o_ref     : (1, cot, tw)          f32   output tile, spatial on lanes
    # agg_ref   : (cot, Kc)             bf16  VMEM scratch: aggregated kernel
    # col_ref   : (Kc, tw)              bf16  VMEM scratch: im2col tile
    num_k = w_ref.shape[0]
    ho_idx = pl.program_id(2)

    # Attention + aggregation, hoisted: once per (batch, C_out tile), reused
    # for every row tile (row-tile axis is innermost and "arbitrary").
    @pl.when(ho_idx == 0)
    def _():
        pooled = pooled_ref[0]                                       # (1, C_in)
        h = jnp.sum(fc1_ref[...] * pooled, axis=1, keepdims=True)    # (hidden,1)
        h = jnp.maximum(h, 0.0)
        logits = jnp.sum(fc2t_ref[...] * h, axis=0, keepdims=True)   # (1, K)
        logits = (logits + b2_ref[...]) * inv_temp
        m = jnp.max(logits, axis=-1, keepdims=True)
        e = jnp.exp(logits - m)
        att = e / jnp.sum(e, axis=-1, keepdims=True)                 # (1, K)
        agg = att[0:1, 0:1] * w_ref[0].astype(jnp.float32)           # (cot, Kc)
        for k in range(1, num_k):
            agg = agg + att[0:1, k:k + 1] * w_ref[k].astype(jnp.float32)
        agg_ref[...] = agg.astype(agg_ref.dtype)

    # Implicit im2col into VMEM: kk*kk shifted slabs with STATIC offsets.
    for kh in range(kk):
        for kw in range(kk):
            t = kh * kk + kw
            s0 = kh * dil * wp + kw * dil
            col_ref[t * cinp:(t + 1) * cinp, :] = x_ref[0, 0, :, s0:s0 + tw]

    # Single MXU matmul per tile; result goes straight to the output block
    # (no multi-step accumulator, so nothing f32 stays live across taps).
    o_ref[0] = jnp.dot(agg_ref[...], col_ref[...],
                       preferred_element_type=jnp.float32).astype(o_ref.dtype)


# ---------------------------------------------------------------------------
# Wrapper
# ---------------------------------------------------------------------------
def dynamic_conv2d(x, params, *, stride=1, padding=0, dilation=1, groups=1,
                   temperature=34.0):
    fc1_w = params["fc1_w"]      # (hidden, C_in)
    fc2_w = params["fc2_w"]      # (K, hidden)
    fc2_b = params["fc2_b"]      # (K,)
    weight = params["weight"]    # (K, C_out, C_in, kk, kk)

    # TODO(synk): groups > 1, bias=True and stride > 1 not implemented.
    assert groups == 1 and stride == 1

    B, C_in, H, W = x.shape
    K, C_out, C_in_g, kk, kk2 = weight.shape
    assert kk == kk2 and C_in_g == C_in
    hidden = fc1_w.shape[0]
    d = int(dilation)
    p = int(padding)

    hp = H + 2 * p
    wp = W + 2 * p
    Ho = hp - d * (kk - 1)
    Wo = wp - d * (kk - 1)
    assert Ho > 0 and Wo > 0

    # ---- generation-aware VMEM budget ---------------------------------------
    try:
        vmem_cap = int(pltpu.get_tpu_info().vmem_capacity_bytes)
    except Exception:
        vmem_cap = 64 * 1024 * 1024
    vmem_limit = max(16 * 1024 * 1024, min(vmem_cap // 2, 64 * 1024 * 1024))

    # ---- C_out tiling (sublanes of the output block) ------------------------
    # Splitting C_out also guarantees >= 2 parallel blocks for v7x megacore
    # when B == 1 and C_out is large.
    if C_out > 256 and C_out % 256 == 0:
        cot = 256
    elif C_out > 128 and C_out % 128 == 0:
        cot = 128
    else:
        cot = C_out
    assert C_out % cot == 0
    n_co = C_out // cot

    # ---- contraction layout: taps x (C_in padded to a sublane multiple) -----
    cinp = _round_up(C_in, 8)
    KK = kk * kk
    Kc = KK * cinp

    # ---- output-row tiling: flattened spatial on the lane axis --------------
    per_lane = 2 * Kc + 8 * cot + 2 * cinp            # col + 2x out + x window
    tw_cap = max(256, min(8192, (vmem_limit // 6) // per_lane))
    if Ho * wp <= tw_cap:
        tho, n_ho = Ho, 1                              # ho_pad == Ho: no junk rows
        tw = Ho * wp
    else:
        mult = 128 // math.gcd(wp, 128)                # so that tw % 128 == 0
        tho = max(mult, (max(1, tw_cap // wp) // mult) * mult)
        tho = min(tho, _round_up(Ho, mult))
        n_ho = pl.cdiv(Ho, tho)
        tw = tho * wp
    ho_pad = n_ho * tho

    # ---- operand preparation (cheap XLA glue, no HBM im2col) ----------------
    tlen = _round_up(tw + (kk - 1) * d * wp + (kk - 1) * d, 128)   # tile + halo
    lpad = (n_ho - 1) * tw + tlen

    xq = x.astype(jnp.bfloat16)
    xpad = jnp.pad(xq, ((0, 0), (0, cinp - C_in), (p, p), (p, p)))
    x_chw = xpad.reshape(B, cinp, hp * wp)
    x_chw = jnp.pad(x_chw, ((0, 0), (0, 0), (0, lpad - hp * wp)))
    if n_ho == 1:
        x_blocks = x_chw.reshape(B, 1, cinp, tlen)
    else:
        idx = (jnp.arange(n_ho) * tw)[:, None] + jnp.arange(tlen)[None, :]
        x_blocks = jnp.transpose(x_chw[:, :, idx], (0, 2, 1, 3))  # (B,n_ho,cinp,tlen)

    # Candidate kernels as (K, C_out, Kc) bf16; contraction index = tap*cinp + c.
    w_r = jnp.transpose(weight, (0, 1, 3, 4, 2))                  # (K,Co,kh,kw,Ci)
    w_r = jnp.pad(w_r, ((0, 0), (0, 0), (0, 0), (0, 0), (0, cinp - C_in)))
    w_t = w_r.reshape(K, C_out, Kc).astype(jnp.bfloat16)

    # Tiny attention operands (exact f32 pooling done by XLA).
    pooled = jnp.mean(x.astype(jnp.float32), axis=(2, 3)).reshape(B, 1, C_in)
    fc1 = fc1_w.astype(jnp.float32)                               # (hidden, C_in)
    fc2t = jnp.transpose(fc2_w).astype(jnp.float32)               # (hidden, K)
    b2 = fc2_b.reshape(1, K).astype(jnp.float32)                  # (1, K)

    kernel = functools.partial(
        _fused_dynconv_kernel, kk=kk, dil=d, wp=wp, cinp=cinp, tw=tw,
        inv_temp=1.0 / float(temperature))

    flops = 2 * B * C_out * Kc * ho_pad * wp
    bytes_accessed = (B * n_ho * cinp * tlen * 2 + K * C_out * Kc * 2
                      + B * C_out * ho_pad * wp * 4
                      + 4 * (B * C_in + hidden * (C_in + K) + K))

    out_flat = pl.pallas_call(
        kernel,
        out_shape=jax.ShapeDtypeStruct((B, C_out, n_ho * tw), jnp.float32),
        grid_spec=pltpu.PrefetchScalarGridSpec(
            num_scalar_prefetch=0,
            grid=(B, n_co, n_ho),
            in_specs=[
                pl.BlockSpec((1, 1, C_in), lambda b, co, ho: (b, 0, 0)),     # pooled
                pl.BlockSpec((hidden, C_in), lambda b, co, ho: (0, 0)),      # fc1
                pl.BlockSpec((hidden, K), lambda b, co, ho: (0, 0)),         # fc2^T
                pl.BlockSpec((1, K), lambda b, co, ho: (0, 0)),              # fc2 bias
                pl.BlockSpec((K, cot, Kc), lambda b, co, ho: (0, co, 0)),    # weights
                pl.BlockSpec((1, 1, cinp, tlen),
                             lambda b, co, ho: (b, ho, 0, 0)),               # x window
            ],
            out_specs=pl.BlockSpec((1, cot, tw), lambda b, co, ho: (b, co, ho)),
            scratch_shapes=[
                pltpu.VMEM((cot, Kc), jnp.bfloat16),   # aggregated kernel
                pltpu.VMEM((Kc, tw), jnp.bfloat16),    # im2col tile
            ],
        ),
        compiler_params=pltpu.CompilerParams(
            dimension_semantics=("parallel", "parallel", "arbitrary"),
            vmem_limit_bytes=vmem_limit,
        ),
        cost_estimate=pl.CostEstimate(flops=flops, transcendentals=B * n_co * K,
                                      bytes_accessed=bytes_accessed),
    )(pooled, fc1, fc2t, b2, w_t, x_blocks)

    # Output is already NCHW-flattened; just strip junk columns / padded rows.
    out = out_flat.reshape(B, C_out, ho_pad, wp)[:, :, :Ho, :Wo]
    return out


# ---------------------------------------------------------------------------
if __name__ == "__main__":
    # module config (defaults of Dynamic_conv2d unless noted)
    B, in_planes, H, W = 2, 4, 16, 16
    out_planes, kernel_size = 8, 3
    ratio, K, temperature = 0.25, 4, 34
    stride, padding, dilation, groups = 1, 1, 1, 1          # padding=1 keeps 16x16

    hidden_planes = int(in_planes * ratio) + 1 if in_planes != 3 else K

    key = jax.random.PRNGKey(0)
    k1, k2, k3, kx = jax.random.split(key, 4)
    # deterministic init mimicking the module's __init__
    fc1_w = jax.random.normal(k1, (hidden_planes, in_planes), jnp.float32) * jnp.sqrt(
        2.0 / hidden_planes)                                # kaiming_normal fan_out
    fc2_w = jax.random.normal(k2, (K, hidden_planes), jnp.float32) * jnp.sqrt(2.0 / K)
    fc2_b = jnp.zeros((K,), jnp.float32)
    bound = float(jnp.sqrt(6.0 / (in_planes * kernel_size * kernel_size)))
    weight = jax.random.uniform(
        k3, (K, out_planes, in_planes // groups, kernel_size, kernel_size),
        jnp.float32, minval=-bound, maxval=bound)           # kaiming_uniform per K

    x = jax.random.normal(kx, (B, in_planes, H, W), jnp.float32)

    params = {"fc1_w": fc1_w, "fc2_w": fc2_w, "fc2_b": fc2_b, "weight": weight}
    out = dynamic_conv2d(x, params, stride=stride, padding=padding,
                         dilation=dilation, groups=groups,
                         temperature=temperature)
    out = jax.block_until_ready(out)

    # ---- pure-JAX reference (bf16-quantized operands, f32 accumulation) -----
    pooled_r = jnp.mean(x, axis=(2, 3))
    h_r = jnp.maximum(pooled_r @ fc1_w.T, 0.0)
    logits_r = h_r @ fc2_w.T + fc2_b[None, :]
    att_ref = jax.nn.softmax(logits_r / temperature, axis=1)
    w_q = weight.astype(jnp.bfloat16).astype(jnp.float32)
    x_q = x.astype(jnp.bfloat16).astype(jnp.float32)
    agg_w = jnp.einsum("bk,kocij->bocij", att_ref, w_q)
    agg_w = agg_w.astype(jnp.bfloat16).astype(jnp.float32)
    ref = jnp.concatenate([
        lax.conv_general_dilated(
            x_q[b:b + 1], agg_w[b], (stride, stride),
            [(padding, padding), (padding, padding)],
            rhs_dilation=(dilation, dilation),
            dimension_numbers=("NCHW", "OIHW", "NCHW"))
        for b in range(B)], axis=0)

    assert out.shape == (B, out_planes, H, W), out.shape
    max_err = float(jnp.max(jnp.abs(out - ref)))
    assert jnp.allclose(out, ref, atol=1e-2, rtol=1e-2), max_err
    print("KERNEL_OK")
</pallas_src>

<mosaic_0001>
module attributes {stable_mosaic.version = 11 : i64} {
  func.func @_fused_dynconv_kernel(%arg0: i32, %arg1: i32, %arg2: i32, %arg3: memref<1x1x4xf32, #tpu.memory_space<vmem>>, %arg4: memref<2x4xf32, #tpu.memory_space<vmem>>, %arg5: memref<2x4xf32, #tpu.memory_space<vmem>>, %arg6: memref<1x4xf32, #tpu.memory_space<vmem>>, %arg7: memref<4x8x72xbf16, #tpu.memory_space<vmem>>, %arg8: memref<1x1x8x384xbf16, #tpu.memory_space<vmem>>, %arg9: memref<1x8x288xf32, #tpu.memory_space<vmem>>, %arg10: memref<8x72xbf16, #tpu.memory_space<vmem>>, %arg11: memref<72x288xbf16, #tpu.memory_space<vmem>>) attributes {dimension_semantics = [#tpu.dimension_semantics<parallel>, #tpu.dimension_semantics<parallel>, #tpu.dimension_semantics<arbitrary>], iteration_bounds = array<i64: 2, 1, 1>, scalar_prefetch = 0 : i64, scratch_operands = 2 : i64, tpu.core_type = #tpu.core_type<tc>, window_params = [{transform_indices = @transform_0, window_bounds = array<i64: 1, 1, 4>}, {pipeline_mode = #tpu.pipeline_mode<synchronous>, transform_indices = @transform_1, window_bounds = array<i64: 2, 4>}, {pipeline_mode = #tpu.pipeline_mode<synchronous>, transform_indices = @transform_2, window_bounds = array<i64: 2, 4>}, {pipeline_mode = #tpu.pipeline_mode<synchronous>, transform_indices = @transform_3, window_bounds = array<i64: 1, 4>}, {transform_indices = @transform_4, window_bounds = array<i64: 4, 8, 72>}, {transform_indices = @transform_5, window_bounds = array<i64: 1, 1, 8, 384>}, {transform_indices = @transform_6, window_bounds = array<i64: 1, 8, 288>}]} {
    %c0_i32 = arith.constant 0 : i32
    %0 = arith.cmpi eq, %arg2, %c0_i32 : i32
    %1 = arith.extui %0 : i1 to i32
    %c0_i32_0 = arith.constant 0 : i32
    %2 = arith.cmpi ne, %1, %c0_i32_0 : i32
    scf.if %2 {
      %c0_45 = arith.constant 0 : index
      %c0_46 = arith.constant 0 : index
      %c0_47 = arith.constant 0 : index
      %36 = vector.load %arg3[%c0_45, %c0_46, %c0_47] : memref<1x1x4xf32, #tpu.memory_space<vmem>>, vector<1x1x4xf32>
      %37 = vector.shape_cast %36 : vector<1x1x4xf32> to vector<1x4xf32>
      %c0_48 = arith.constant 0 : index
      %c0_49 = arith.constant 0 : index
      %38 = vector.load %arg4[%c0_48, %c0_49] : memref<2x4xf32, #tpu.memory_space<vmem>>, vector<2x4xf32>
      %39 = vector.broadcast %37 : vector<1x4xf32> to vector<2x4xf32>
      %40 = arith.mulf %38, %39 : vector<2x4xf32>
      %cst_50 = arith.constant dense<0.000000e+00> : vector<2xf32>
      %41 = vector.multi_reduction <add>, %40, %cst_50 [1] : vector<2x4xf32> to vector<2xf32>
      %42 = vector.shape_cast %41 : vector<2xf32> to vector<2x1xf32>
      %cst_51 = arith.constant 0.000000e+00 : f32
      %43 = vector.broadcast %cst_51 : f32 to vector<2x1xf32>
      %44 = arith.maximumf %42, %43 : vector<2x1xf32>
      %c0_52 = arith.constant 0 : index
      %c0_53 = arith.constant 0 : index
      %45 = vector.load %arg5[%c0_52, %c0_53] : memref<2x4xf32, #tpu.memory_space<vmem>>, vector<2x4xf32>
      %46 = vector.broadcast %44 : vector<2x1xf32> to vector<2x4xf32>
      %47 = arith.mulf %45, %46 : vector<2x4xf32>
      %cst_54 = arith.constant dense<0.000000e+00> : vector<4xf32>
      %48 = vector.multi_reduction <add>, %47, %cst_54 [0] : vector<2x4xf32> to vector<4xf32>
      %49 = vector.shape_cast %48 : vector<4xf32> to vector<1x4xf32>
      %c0_55 = arith.constant 0 : index
      %c0_56 = arith.constant 0 : index
      %50 = vector.load %arg6[%c0_55, %c0_56] : memref<1x4xf32, #tpu.memory_space<vmem>>, vector<1x4xf32>
      %51 = arith.addf %49, %50 : vector<1x4xf32>
      %cst_57 = arith.constant 0.0294117648 : f32
      %52 = vector.broadcast %cst_57 : f32 to vector<1x4xf32>
      %53 = arith.mulf %51, %52 : vector<1x4xf32>
      %cst_58 = arith.constant dense<0xFF800000> : vector<1xf32>
      %54 = vector.multi_reduction <maximumf>, %53, %cst_58 [1] : vector<1x4xf32> to vector<1xf32>
      %55 = vector.shape_cast %54 : vector<1xf32> to vector<1x1xf32>
      %56 = vector.broadcast %55 : vector<1x1xf32> to vector<1x4xf32>
      %57 = arith.subf %53, %56 : vector<1x4xf32>
      %58 = math.exp %57 : vector<1x4xf32>
      %cst_59 = arith.constant dense<0.000000e+00> : vector<1xf32>
      %59 = vector.multi_reduction <add>, %58, %cst_59 [1] : vector<1x4xf32> to vector<1xf32>
      %60 = vector.shape_cast %59 : vector<1xf32> to vector<1x1xf32>
      %61 = vector.broadcast %60 : vector<1x1xf32> to vector<1x4xf32>
      %62 = arith.divf %58, %61 : vector<1x4xf32>
      %63 = vector.extract_strided_slice %62 {offsets = [0, 0], sizes = [1, 1], strides = [1, 1]} : vector<1x4xf32> to vector<1x1xf32>
      %c0_60 = arith.constant 0 : index
      %c0_61 = arith.constant 0 : index
      %c0_62 = arith.constant 0 : index
      %64 = vector.load %arg7[%c0_60, %c0_61, %c0_62] : memref<4x8x72xbf16, #tpu.memory_space<vmem>>, vector<1x8x72xbf16>
      %65 = vector.shape_cast %64 : vector<1x8x72xbf16> to vector<8x72xbf16>
      %66 = arith.extf %65 : vector<8x72xbf16> to vector<8x72xf32>
      %67 = vector.broadcast %63 : vector<1x1xf32> to vector<8x72xf32>
      %68 = arith.mulf %67, %66 : vector<8x72xf32>
      %69 = vector.extract_strided_slice %62 {offsets = [0, 1], sizes = [1, 1], strides = [1, 1]} : vector<1x4xf32> to vector<1x1xf32>
      %c1_63 = arith.constant 1 : index
      %c0_64 = arith.constant 0 : index
      %c0_65 = arith.constant 0 : index
      %70 = vector.load %arg7[%c1_63, %c0_64, %c0_65] : memref<4x8x72xbf16, #tpu.memory_space<vmem>>, vector<1x8x72xbf16>
      %71 = vector.shape_cast %70 : vector<1x8x72xbf16> to vector<8x72xbf16>
      %72 = arith.extf %71 : vector<8x72xbf16> to vector<8x72xf32>
      %73 = vector.broadcast %69 : vector<1x1xf32> to vector<8x72xf32>
      %74 = arith.mulf %73, %72 : vector<8x72xf32>
      %75 = arith.addf %68, %74 : vector<8x72xf32>
      %76 = vector.extract_strided_slice %62 {offsets = [0, 2], sizes = [1, 1], strides = [1, 1]} : vector<1x4xf32> to vector<1x1xf32>
      %c2_66 = arith.constant 2 : index
      %c0_67 = arith.constant 0 : index
      %c0_68 = arith.constant 0 : index
      %77 = vector.load %arg7[%c2_66, %c0_67, %c0_68] : memref<4x8x72xbf16, #tpu.memory_space<vmem>>, vector<1x8x72xbf16>
      %78 = vector.shape_cast %77 : vector<1x8x72xbf16> to vector<8x72xbf16>
      %79 = arith.extf %78 : vector<8x72xbf16> to vector<8x72xf32>
      %80 = vector.broadcast %76 : vector<1x1xf32> to vector<8x72xf32>
      %81 = arith.mulf %80, %79 : vector<8x72xf32>
      %82 = arith.addf %75, %81 : vector<8x72xf32>
      %83 = vector.extract_strided_slice %62 {offsets = [0, 3], sizes = [1, 1], strides = [1, 1]} : vector<1x4xf32> to vector<1x1xf32>
      %c3 = arith.constant 3 : index
      %c0_69 = arith.constant 0 : index
      %c0_70 = arith.constant 0 : index
      %84 = vector.load %arg7[%c3, %c0_69, %c0_70] : memref<4x8x72xbf16, #tpu.memory_space<vmem>>, vector<1x8x72xbf16>
      %85 = vector.shape_cast %84 : vector<1x8x72xbf16> to vector<8x72xbf16>
      %86 = arith.extf %85 : vector<8x72xbf16> to vector<8x72xf32>
      %87 = vector.broadcast %83 : vector<1x1xf32> to vector<8x72xf32>
      %88 = arith.mulf %87, %86 : vector<8x72xf32>
      %89 = arith.addf %82, %88 : vector<8x72xf32>
      %90 = arith.truncf %89 : vector<8x72xf32> to vector<8x72xbf16>
      %c0_71 = arith.constant 0 : index
      %c0_72 = arith.constant 0 : index
      %91 = vector.load %arg10[%c0_71, %c0_72] : memref<8x72xbf16, #tpu.memory_space<vmem>>, vector<8x72xbf16>
      tpu.vector_store %arg10[%c0_71, %c0_72], %90 {strides = array<i32>} : memref<8x72xbf16, #tpu.memory_space<vmem>>, vector<8x72xbf16>,
    } else {
    }
    %c0 = arith.constant 0 : index
    %c0_1 = arith.constant 0 : index
    %c0_2 = arith.constant 0 : index
    %c0_3 = arith.constant 0 : index
    %3 = vector.load %arg8[%c0, %c0_1, %c0_2, %c0_3] : memref<1x1x8x384xbf16, #tpu.memory_space<vmem>>, vector<1x1x8x288xbf16>
    %4 = vector.shape_cast %3 : vector<1x1x8x288xbf16> to vector<8x288xbf16>
    %c0_4 = arith.constant 0 : index
    %c0_5 = arith.constant 0 : index
    %5 = vector.load %arg11[%c0_4, %c0_5] : memref<72x288xbf16, #tpu.memory_space<vmem>>, vector<8x288xbf16>
    tpu.vector_store %arg11[%c0_4, %c0_5], %4 {strides = array<i32>} : memref<72x288xbf16, #tpu.memory_space<vmem>>, vector<8x288xbf16>,
    %c0_6 = arith.constant 0 : index
    %c0_7 = arith.constant 0 : index
    %c0_8 = arith.constant 0 : index
    %c1 = arith.constant 1 : index
    %6 = vector.load %arg8[%c0_6, %c0_7, %c0_8, %c1] : memref<1x1x8x384xbf16, #tpu.memory_space<vmem>>, vector<1x1x8x288xbf16>
    %7 = vector.shape_cast %6 : vector<1x1x8x288xbf16> to vector<8x288xbf16>
    %c8 = arith.constant 8 : index
    %c0_9 = arith.constant 0 : index
    %8 = vector.load %arg11[%c8, %c0_9] : memref<72x288xbf16, #tpu.memory_space<vmem>>, vector<8x288xbf16>
    tpu.vector_store %arg11[%c8, %c0_9], %7 {strides = array<i32>} : memref<72x288xbf16, #tpu.memory_space<vmem>>, vector<8x288xbf16>,
    %c0_10 = arith.constant 0 : index
    %c0_11 = arith.constant 0 : index
    %c0_12 = arith.constant 0 : index
    %c2 = arith.constant 2 : index
    %9 = vector.load %arg8[%c0_10, %c0_11, %c0_12, %c2] : memref<1x1x8x384xbf16, #tpu.memory_space<vmem>>, vector<1x1x8x288xbf16>
    %10 = vector.shape_cast %9 : vector<1x1x8x288xbf16> to vector<8x288xbf16>
    %c16 = arith.constant 16 : index
    %c0_13 = arith.constant 0 : index
    %11 = vector.load %arg11[%c16, %c0_13] : memref<72x288xbf16, #tpu.memory_space<vmem>>, vector<8x288xbf16>
    tpu.vector_store %arg11[%c16, %c0_13], %10 {strides = array<i32>} : memref<72x288xbf16, #tpu.memory_space<vmem>>, vector<8x288xbf16>,
    %c0_14 = arith.constant 0 : index
    %c0_15 = arith.constant 0 : index
    %c0_16 = arith.constant 0 : index
    %c18 = arith.constant 18 : index
    %12 = vector.load %arg8[%c0_14, %c0_15, %c0_16, %c18] : memref<1x1x8x384xbf16, #tpu.memory_space<vmem>>, vector<1x1x8x288xbf16>
    %13 = vector.shape_cast %12 : vector<1x1x8x288xbf16> to vector<8x288xbf16>
    %c24 = arith.constant 24 : index
    %c0_17 = arith.constant 0 : index
    %14 = vector.load %arg11[%c24, %c0_17] : memref<72x288xbf16, #tpu.memory_space<vmem>>, vector<8x288xbf16>
    tpu.vector_store %arg11[%c24, %c0_17], %13 {strides = array<i32>} : memref<72x288xbf16, #tpu.memory_space<vmem>>, vector<8x288xbf16>,
    %c0_18 = arith.constant 0 : index
    %c0_19 = arith.constant 0 : index
    %c0_20 = arith.constant 0 : index
    %c19 = arith.constant 19 : index
    %15 = vector.load %arg8[%c0_18, %c0_19, %c0_20, %c19] : memref<1x1x8x384xbf16, #tpu.memory_space<vmem>>, vector<1x1x8x288xbf16>
    %16 = vector.shape_cast %15 : vector<1x1x8x288xbf16> to vector<8x288xbf16>
    %c32 = arith.constant 32 : index
    %c0_21 = arith.constant 0 : index
    %17 = vector.load %arg11[%c32, %c0_21] : memref<72x288xbf16, #tpu.memory_space<vmem>>, vector<8x288xbf16>
    tpu.vector_store %arg11[%c32, %c0_21], %16 {strides = array<i32>} : memref<72x288xbf16, #tpu.memory_space<vmem>>, vector<8x288xbf16>,
    %c0_22 = arith.constant 0 : index
    %c0_23 = arith.constant 0 : index
    %c0_24 = arith.constant 0 : index
    %c20 = arith.constant 20 : index
    %18 = vector.load %arg8[%c0_22, %c0_23, %c0_24, %c20] : memref<1x1x8x384xbf16, #tpu.memory_space<vmem>>, vector<1x1x8x288xbf16>
    %19 = vector.shape_cast %18 : vector<1x1x8x288xbf16> to vector<8x288xbf16>
    %c40 = arith.constant 40 : index
    %c0_25 = arith.constant 0 : index
    %20 = vector.load %arg11[%c40, %c0_25] : memref<72x288xbf16, #tpu.memory_space<vmem>>, vector<8x288xbf16>
    tpu.vector_store %arg11[%c40, %c0_25], %19 {strides = array<i32>} : memref<72x288xbf16, #tpu.memory_space<vmem>>, vector<8x288xbf16>,
    %c0_26 = arith.constant 0 : index
    %c0_27 = arith.constant 0 : index
    %c0_28 = arith.constant 0 : index
    %c36 = arith.constant 36 : index
    %21 = vector.load %arg8[%c0_26, %c0_27, %c0_28, %c36] : memref<1x1x8x384xbf16, #tpu.memory_space<vmem>>, vector<1x1x8x288xbf16>
    %22 = vector.shape_cast %21 : vector<1x1x8x288xbf16> to vector<8x288xbf16>
    %c48 = arith.constant 48 : index
    %c0_29 = arith.constant 0 : index
    %23 = vector.load %arg11[%c48, %c0_29] : memref<72x288xbf16, #tpu.memory_space<vmem>>, vector<8x288xbf16>
    tpu.vector_store %arg11[%c48, %c0_29], %22 {strides = array<i32>} : memref<72x288xbf16, #tpu.memory_space<vmem>>, vector<8x288xbf16>,
    %c0_30 = arith.constant 0 : index
    %c0_31 = arith.constant 0 : index
    %c0_32 = arith.constant 0 : index
    %c37 = arith.constant 37 : index
    %24 = vector.load %arg8[%c0_30, %c0_31, %c0_32, %c37] : memref<1x1x8x384xbf16, #tpu.memory_space<vmem>>, vector<1x1x8x288xbf16>
    %25 = vector.shape_cast %24 : vector<1x1x8x288xbf16> to vector<8x288xbf16>
    %c56 = arith.constant 56 : index
    %c0_33 = arith.constant 0 : index
    %26 = vector.load %arg11[%c56, %c0_33] : memref<72x288xbf16, #tpu.memory_space<vmem>>, vector<8x288xbf16>
    tpu.vector_store %arg11[%c56, %c0_33], %25 {strides = array<i32>} : memref<72x288xbf16, #tpu.memory_space<vmem>>, vector<8x288xbf16>,
    %c0_34 = arith.constant 0 : index
    %c0_35 = arith.constant 0 : index
    %c0_36 = arith.constant 0 : index
    %c38 = arith.constant 38 : index
    %27 = vector.load %arg8[%c0_34, %c0_35, %c0_36, %c38] : memref<1x1x8x384xbf16, #tpu.memory_space<vmem>>, vector<1x1x8x288xbf16>
    %28 = vector.shape_cast %27 : vector<1x1x8x288xbf16> to vector<8x288xbf16>
    %c64 = arith.constant 64 : index
    %c0_37 = arith.constant 0 : index
    %29 = vector.load %arg11[%c64, %c0_37] : memref<72x288xbf16, #tpu.memory_space<vmem>>, vector<8x288xbf16>
    tpu.vector_store %arg11[%c64, %c0_37], %28 {strides = array<i32>} : memref<72x288xbf16, #tpu.memory_space<vmem>>, vector<8x288xbf16>,
    %c0_38 = arith.constant 0 : index
    %c0_39 = arith.constant 0 : index
    %30 = vector.load %arg10[%c0_38, %c0_39] : memref<8x72xbf16, #tpu.memory_space<vmem>>, vector<8x72xbf16>
    %c0_40 = arith.constant 0 : index
    %c0_41 = arith.constant 0 : index
    %31 = vector.load %arg11[%c0_40, %c0_41] : memref<72x288xbf16, #tpu.memory_space<vmem>>, vector<72x288xbf16>
    %cst = arith.constant dense<0.000000e+00> : vector<8x288xf32>
    %32 = tpu.matmul %30, %31, %cst {dimension_numbers = #tpu.dot_dimension_numbers<[1], [0], [0], [1], [0, 0, 1, 1], [], []>} : vector<8x72xbf16>, vector<72x288xbf16>, vector<8x288xf32> -> vector<8x288xf32>
    %c0_42 = arith.constant 0 : index
    %c0_43 = arith.constant 0 : index
    %c0_44 = arith.constant 0 : index
    %33 = vector.load %arg9[%c0_42, %c0_43, %c0_44] : memref<1x8x288xf32, #tpu.memory_space<vmem>>, vector<1x8x288xf32>
    %34 = vector.shape_cast %33 : vector<1x8x288xf32> to vector<8x288xf32>
    %35 = vector.shape_cast %32 : vector<8x288xf32> to vector<1x8x288xf32>
    tpu.vector_store %arg9[%c0_42, %c0_43, %c0_44], %35 {strides = array<i32>} : memref<1x8x288xf32, #tpu.memory_space<vmem>>, vector<1x8x288xf32>,
    return
  }
  func.func @transform_0(%arg0: i32, %arg1: i32, %arg2: i32) -> (i32, i32, i32) {
    %c0_i32 = arith.constant 0 : i32
    %c0_i32_0 = arith.constant 0 : i32
    %c0_i32_1 = arith.constant 0 : i32
    return %arg0, %c0_i32, %c0_i32_0 : i32, i32, i32
  }
  func.func @transform_1(%arg0: i32, %arg1: i32, %arg2: i32) -> (i32, i32) {
    %c0_i32 = arith.constant 0 : i32
    %c0_i32_0 = arith.constant 0 : i32
    %c0_i32_1 = arith.constant 0 : i32
    return %c0_i32, %c0_i32_0 : i32, i32
  }
  func.func @transform_2(%arg0: i32, %arg1: i32, %arg2: i32) -> (i32, i32) {
    %c0_i32 = arith.constant 0 : i32
    %c0_i32_0 = arith.constant 0 : i32
    %c0_i32_1 = arith.constant 0 : i32
    return %c0_i32, %c0_i32_0 : i32, i32
  }
  func.func @transform_3(%arg0: i32, %arg1: i32, %arg2: i32) -> (i32, i32) {
    %c0_i32 = arith.constant 0 : i32
    %c0_i32_0 = arith.constant 0 : i32
    %c0_i32_1 = arith.constant 0 : i32
    return %c0_i32, %c0_i32_0 : i32, i32
  }
  func.func @transform_4(%arg0: i32, %arg1: i32, %arg2: i32) -> (i32, i32, i32) {
    %c0_i32 = arith.constant 0 : i32
    %c0_i32_0 = arith.constant 0 : i32
    %c0_i32_1 = arith.constant 0 : i32
    return %c0_i32, %arg1, %c0_i32_0 : i32, i32, i32
  }
  func.func @transform_5(%arg0: i32, %arg1: i32, %arg2: i32) -> (i32, i32, i32, i32) {
    %c0_i32 = arith.constant 0 : i32
    %c0_i32_0 = arith.constant 0 : i32
    %c0_i32_1 = arith.constant 0 : i32
    return %arg0, %arg2, %c0_i32, %c0_i32_0 : i32, i32, i32, i32
  }
  func.func @transform_6(%arg0: i32, %arg1: i32, %arg2: i32) -> (i32, i32, i32) {
    %c0_i32 = arith.constant 0 : i32
    return %arg0, %arg1, %arg2 : i32, i32, i32
  }
}

</mosaic_0001>

<llo_original>
// kernel: tpu_custom_call.1
$region0: #{tpu_custom_call.1}
  #allocation0 [shape = 'u32[]', space=smem, size = 0x4, offset = 0x4, fixed_abs, tag = 'smem constant byte address 0x4 - core index']
  #allocation1 [shape = 'u32[144,128]{1,0:T(1,128)}', space=vmem, size = 0x12000, scoped, tag = 'internal scratch']
  #allocation2 [shape = 'bf16[8,72]{1,0:T(8,128)(2,1)}', space=vmem, size = 0x800, scoped, tag = 'scratch operand']
  #allocation3 [shape = 'bf16[72,288]{1,0:T(8,128)(2,1)}', space=vmem, size = 0xd800, scoped, tag = 'scratch operand']
  %s0 = inlined_call_operand.hbm [shape: f32[2,1,4], index: 0, kind: input, shape index: {}]
  %s1 = inlined_call_operand.vmem [shape: f32[2,4], index: 1, kind: input, shape index: {}]
  %s2 = inlined_call_operand.vmem [shape: f32[2,4], index: 2, kind: input, shape index: {}]
  %s3 = inlined_call_operand.vmem [shape: f32[1,4], index: 3, kind: input, shape index: {}]
  %s4 = inlined_call_operand.hbm [shape: bf16[4,8,72], index: 4, kind: input, shape index: {}]
  %s5 = inlined_call_operand.hbm [shape: bf16[2,1,8,384], index: 5, kind: input, shape index: {}]
  %s6 = inlined_call_operand.hbm [shape: f32[2,8,288], index: 6, kind: output, shape index: {}]
  %s7 = sld [smem:[#allocation0]]
  $region73: #{tpu_custom_call.1} parent=0
    _
  %s9 = ssub.s32 1, %s7
  %s10 = scalar_select 0, %s9, %s7
  $region1: #{tpu_custom_call.1} parent=0
    #allocation4 [shape = 'u8[1024]{0}', space=vmem, size = 0x400, scoped, tag = 'input window, operand 0']
    #allocation5 [shape = 's32[2]{0}', space=sflag, size = 0x8, scoped, tag = 'scoped memory for tpu_custom_call.1']
    #allocation6 [shape = 's32[2]{0}', space=sflag, size = 0x8, scoped, tag = 'scoped memory for tpu_custom_call.1']
    #allocation7 [shape = 'u8[8192]{0}', space=vmem, size = 0x2000, scoped, tag = 'input window, operand 4, single buffered']
    #allocation8 [shape = 's32[1]{0}', space=sflag, size = 0x4, scoped, tag = 'scoped memory for tpu_custom_call.1']
    #allocation9 [shape = 'u8[12288]{0}', space=vmem, size = 0x3000, scoped, tag = 'input window, operand 5']
    #allocation10 [shape = 'u8[24576]{0}', space=vmem, size = 0x6000, scoped, tag = 'output window, operand 0']
    %11 = vsyncpa [#allocation5], 0
    %s12 = scalar_lea.sflag [#allocation5], 1
    %13 = vsyncpa %s12, 0
    %14 = vsyncpa [#allocation8], 0
    %15 = vsyncpa [#allocation6], 0
    %s16 = scalar_lea.sflag [#allocation6], 1
    %17 = vsyncpa %s16, 0
    loop: start=0, step=1, limit=4
    $region2: #{tpu_custom_call.1} parent=1 // loop_pre_header
      _
    $region3: #{tpu_custom_call.1} parent=1 // loop_header
      %s19 = sphi 0, %s23
      %p20 = scmp.ge.s32.totalorder %s19, 4
      %s26 = sphi 0, %s45
      %s27 = sphi 0, %s41
      %s28 = sphi 0, %s37
      %s29 = sphi 0, %s26
      %s30 = sphi 0, %s27
      %s31 = sphi 0, %s28
      %s32 = sphi 0, %s29
      %s33 = sphi 0, %s30
      %s34 = sphi 0, %s31
      %s48 = sphi 0, %s50
      %s51 = sphi 0, %s48
      %s52 = sphi 0, %s51
      %s68 = sphi 0, %s52
      %s72 = sphi 0, %s72
      %s74 = sphi 0, %s72
      %s75 = sphi 0, %s74
      %s89 = sphi 0, %s75
      %s93 = sphi 0, %s93
      %s95 = sphi 0, %s93
      %s96 = sphi 0, %s95
      %s110 = sphi 0, %s96
      %s114 = sphi 0, %s114
      %s116 = sphi 0, %s114
      %s117 = sphi 0, %s116
      %s131 = sphi 0, %s117
      %s137 = sphi 0, %s139
      %s140 = sphi 0, %s137
      %s141 = sphi 0, %s140
      %s157 = sphi 0, %s141
      %s165 = sphi 0, %s167
      %s168 = sphi 0, %s165
      %s169 = sphi 0, %s168
      %s185 = sphi 0, %s169
      %s195 = sphi 0, %s197
      %s198 = sphi 0, %s195
      %s199 = sphi 0, %s198
      %s215 = sphi 0, %s199
    $region4: #{tpu_custom_call.1} parent=1 // loop_header_branch
      %22 = sbr.rel (%p20) target = $region8
    $region5: #{tpu_custom_call.1} parent=1 // loop_body
      %s24 = ssub.s32 %s19, 1
      %s25 = ssub.s32 %s19, 2
      %s35 = sadd.s32 1, %s28
      %p36 = scmp.ge.s32.totalorder %s35, 1
      %s37 = scalar_select %p36, 0, %s35
      %s38 = sadd.s32 1, %s27
      %s39 = scalar_select %p36, %s38, %s27
      %p40 = scmp.ge.s32.totalorder %s39, 1
      %s41 = scalar_select %p40, 0, %s39
      %s42 = sadd.s32 1, %s26
      %s43 = scalar_select %p40, %s42, %s26
      %p44 = scmp.ge.s32.totalorder %s43, 2
      %s45 = scalar_select %p44, 0, %s43
      %s46 = ssub.s32 %s26, %s45
      %p47 = scmp.eq.s32.totalorder %s46, 0
      %s49 = sadd.s32 %s48, 1
      %s50 = scalar_select %p47, %s48, %s49
      %p53 = pneg %p47
      %p54 = scmp.eq.s32.totalorder %s19, 1
      %p55 = por %p53, %p54
      %p56 = scmp.ne.s32.totalorder %s48, %s51
      %p57 = scmp.eq.s32.totalorder %s19, 0
      %p58 = por %p56, %p57
      %p59 = scmp.ne.s32.totalorder %s48, %s51
      %p60 = scmp.eq.s32.totalorder %s24, 1
      %p61 = por %p59, %p60
      %p62 = scmp.ne.s32.totalorder %s51, %s52
      %p63 = scmp.eq.s32.totalorder %s24, 0
      %p64 = por %p62, %p63
      %p65 = scmp.ne.s32.totalorder %s51, %s52
      %p66 = scmp.eq.s32.totalorder %s25, 1
      %p67 = por %p65, %p66
      %p69 = scmp.ne.s32.totalorder %s52, %s68
      %p70 = scmp.eq.s32.totalorder %s25, 0
      %p71 = por %p69, %p70
      %s73 = sadd.s32 %s72, 1
      %p76 = scmp.eq.s32.totalorder %s19, 1
      %p77 = scmp.ne.s32.totalorder %s72, %s74
      %p78 = scmp.eq.s32.totalorder %s19, 0
      %p79 = por %p77, %p78
      %p80 = scmp.ne.s32.totalorder %s72, %s74
      %p81 = scmp.eq.s32.totalorder %s24, 1
      %p82 = por %p80, %p81
      %p83 = scmp.ne.s32.totalorder %s74, %s75
      %p84 = scmp.eq.s32.totalorder %s24, 0
      %p85 = por %p83, %p84
      %p86 = scmp.ne.s32.totalorder %s74, %s75
      %p87 = scmp.eq.s32.totalorder %s25, 1
      %p88 = por %p86, %p87
      %p90 = scmp.ne.s32.totalorder %s75, %s89
      %p91 = scmp.eq.s32.totalorder %s25, 0
      %p92 = por %p90, %p91
      %s94 = sadd.s32 %s93, 1
      %p97 = scmp.eq.s32.totalorder %s19, 1
      %p98 = scmp.ne.s32.totalorder %s93, %s95
      %p99 = scmp.eq.s32.totalorder %s19, 0
      %p100 = por %p98, %p99
      %p101 = scmp.ne.s32.totalorder %s93, %s95
      %p102 = scmp.eq.s32.totalorder %s24, 1
      %p103 = por %p101, %p102
      %p104 = scmp.ne.s32.totalorder %s95, %s96
      %p105 = scmp.eq.s32.totalorder %s24, 0
      %p106 = por %p104, %p105
      %p107 = scmp.ne.s32.totalorder %s95, %s96
      %p108 = scmp.eq.s32.totalorder %s25, 1
      %p109 = por %p107, %p108
      %p111 = scmp.ne.s32.totalorder %s96, %s110
      %p112 = scmp.eq.s32.totalorder %s25, 0
      %p113 = por %p111, %p112
      %s115 = sadd.s32 %s114, 1
      %p118 = scmp.eq.s32.totalorder %s19, 1
      %p119 = scmp.ne.s32.totalorder %s114, %s116
      %p120 = scmp.eq.s32.totalorder %s19, 0
      %p121 = por %p119, %p120
      %p122 = scmp.ne.s32.totalorder %s114, %s116
      %p123 = scmp.eq.s32.totalorder %s24, 1
      %p124 = por %p122, %p123
      %p125 = scmp.ne.s32.totalorder %s116, %s117
      %p126 = scmp.eq.s32.totalorder %s24, 0
      %p127 = por %p125, %p126
      %p128 = scmp.ne.s32.totalorder %s116, %s117
      %p129 = scmp.eq.s32.totalorder %s25, 1
      %p130 = por %p128, %p129
      %p132 = scmp.ne.s32.totalorder %s117, %s131
      %p133 = scmp.eq.s32.totalorder %s25, 0
      %p134 = por %p132, %p133
      %s135 = ssub.s32 %s27, %s41
      %p136 = scmp.eq.s32.totalorder %s135, 0
      %s138 = sadd.s32 %s137, 1
      %s139 = scalar_select %p136, %s137, %s138
      %p142 = pneg %p136
      %p143 = scmp.eq.s32.totalorder %s19, 1
      %p144 = por %p142, %p143
      %p145 = scmp.ne.s32.totalorder %s137, %s140
      %p146 = scmp.eq.s32.totalorder %s19, 0
      %p147 = por %p145, %p146
      %p148 = scmp.ne.s32.totalorder %s137, %s140
      %p149 = scmp.eq.s32.totalorder %s24, 1
      %p150 = por %p148, %p149
      %p151 = scmp.ne.s32.totalorder %s140, %s141
      %p152 = scmp.eq.s32.totalorder %s24, 0
      %p153 = por %p151, %p152
      %p154 = scmp.ne.s32.totalorder %s140, %s141
      %p155 = scmp.eq.s32.totalorder %s25, 1
      %p156 = por %p154, %p155
      %p158 = scmp.ne.s32.totalorder %s141, %s157
      %p159 = scmp.eq.s32.totalorder %s25, 0
      %p160 = por %p158, %p159
      %s161 = ssub.s32 %s26, %s45
      %s162 = ssub.s32 %s28, %s37
      %s163 = sor.u32 %s161, %s162
      %p164 = scmp.eq.s32.totalorder %s163, 0
      %s166 = sadd.s32 %s165, 1
      %s167 = scalar_select %p164, %s165, %s166
      %p170 = pneg %p164
      %p171 = scmp.eq.s32.totalorder %s19, 1
      %p172 = por %p170, %p171
      %p173 = scmp.ne.s32.totalorder %s165, %s168
      %p174 = scmp.eq.s32.totalorder %s19, 0
      %p175 = por %p173, %p174
      %p176 = scmp.ne.s32.totalorder %s165, %s168
      %p177 = scmp.eq.s32.totalorder %s24, 1
      %p178 = por %p176, %p177
      %p179 = scmp.ne.s32.totalorder %s168, %s169
      %p180 = scmp.eq.s32.totalorder %s24, 0
      %p181 = por %p179, %p180
      %p182 = scmp.ne.s32.totalorder %s168, %s169
      %p183 = scmp.eq.s32.totalorder %s25, 1
      %p184 = por %p182, %p183
      %p186 = scmp.ne.s32.totalorder %s169, %s185
      %p187 = scmp.eq.s32.totalorder %s25, 0
      %p188 = por %p186, %p187
      %s189 = ssub.s32 %s26, %s45
      %s190 = ssub.s32 %s27, %s41
      %s191 = sor.u32 %s189, %s190
      %s192 = ssub.s32 %s28, %s37
      %s193 = sor.u32 %s191, %s192
      %p194 = scmp.eq.s32.totalorder %s193, 0
      %s196 = sadd.s32 %s195, 1
      %s197 = scalar_select %p194, %s195, %s196
      %p200 = pneg %p194
      %p201 = scmp.eq.s32.totalorder %s19, 1
      %p202 = por %p200, %p201
      %p203 = scmp.ne.s32.totalorder %s195, %s198
      %p204 = scmp.eq.s32.totalorder %s19, 0
      %p205 = por %p203, %p204
      %p206 = scmp.ne.s32.totalorder %s195, %s198
      %p207 = scmp.eq.s32.totalorder %s24, 1
      %p208 = por %p206, %p207
      %p209 = scmp.ne.s32.totalorder %s198, %s199
      %p210 = scmp.eq.s32.totalorder %s24, 0
      %p211 = por %p209, %p210
      %p212 = scmp.ne.s32.totalorder %s198, %s199
      %p213 = scmp.eq.s32.totalorder %s25, 1
      %p214 = por %p212, %p213
      %p216 = scmp.ne.s32.totalorder %s199, %s215
      %p217 = scmp.eq.s32.totalorder %s25, 0
      %p218 = por %p216, %p217
      %p219 = scmp.le.s32.totalorder 1, %s19
      %p220 = scmp.lt.s32.totalorder %s19, 3
      %p221 = pnand %p219, %p220
      %p222 = pneg %p221
      // Predicated region
      $region9: #{tpu_custom_call.1} parent=5 // pred_check
        _
      $region10: #{tpu_custom_call.1} parent=5 // pred_check_branch
        %224 = sbr.rel (%p221) target = $region12
      $region11: #{tpu_custom_call.1} parent=5 // pred_region
        %s225 = ssub.s32 %s19, 1
        // Predicated region
        $region13: #{tpu_custom_call.1} parent=11 // pred_check
          %p226 = pneg %p85
        $region14: #{tpu_custom_call.1} parent=11 // pred_check_branch
          %228 = sbr.rel (%p226) target = $region16
        $region15: #{tpu_custom_call.1} parent=11 // pred_region
          _
        $region16: #{tpu_custom_call.1} parent=11 // pred_fallthru
          _
        // Predicated region
        $region17: #{tpu_custom_call.1} parent=11 // pred_check
          %p229 = pneg %p106
        $region18: #{tpu_custom_call.1} parent=11 // pred_check_branch
          %231 = sbr.rel (%p229) target = $region20
        $region19: #{tpu_custom_call.1} parent=11 // pred_region
          _
        $region20: #{tpu_custom_call.1} parent=11 // pred_fallthru
          _
        // Predicated region
        $region21: #{tpu_custom_call.1} parent=11 // pred_check
          %p232 = pneg %p127
        $region22: #{tpu_custom_call.1} parent=11 // pred_check_branch
          %234 = sbr.rel (%p232) target = $region24
        $region23: #{tpu_custom_call.1} parent=11 // pred_region
          _
        $region24: #{tpu_custom_call.1} parent=11 // pred_fallthru
          _
        // Predicated region
        $region25: #{tpu_custom_call.1} parent=11 // pred_check
          %p235 = pneg %p153
        $region26: #{tpu_custom_call.1} parent=11 // pred_check_branch
          %237 = sbr.rel (%p235) target = $region28
        $region27: #{tpu_custom_call.1} parent=11 // pred_region
          %s239 = ssub.s32 256, 256
          %240 = vsyncadd [#allocation8], %s239
          %s241 = smul.addr %s30, 64
          %s242 = scalar_lea.hbm %s4, %s241
          %s243 = sshll.u32 [#allocation7], 4
          %s244 = int_to_ptr.vmem [resolvable:$true] %s243
          %249 = dma.hbm_to_vmem [thread:$0]  %s242, 256, %s244, [#allocation8], 64, 64, 4
        $region28: #{tpu_custom_call.1} parent=11 // pred_fallthru
          _
      $region12: #{tpu_custom_call.1} parent=5 // pred_fallthru
        _
      %p250 = scmp.lt.s32.totalorder %s19, 2
      // Predicated region
      $region29: #{tpu_custom_call.1} parent=5 // pred_check
        %p251 = pneg %p250
      $region30: #{tpu_custom_call.1} parent=5 // pred_check_branch
        %253 = sbr.rel (%p251) target = $region32
      $region31: #{tpu_custom_call.1} parent=5 // pred_region
        // Predicated region
        $region33: #{tpu_custom_call.1} parent=31 // pred_check
          %p254 = pneg %p58
        $region34: #{tpu_custom_call.1} parent=31 // pred_check_branch
          %256 = sbr.rel (%p254) target = $region36
        $region35: #{tpu_custom_call.1} parent=31 // pred_region
          %s257 = sand.u32 %s19, 1
          %s258 = scalar_lea.sflag [#allocation5], %s257
          %s259 = sand.u32 %s48, 1
          %s260 = scalar_lea.vmem [#allocation4], %s259
          %s262 = ssub.s32 16, 16
          %263 = vsyncadd %s258, %s262
          %s264 = smul.addr %s26, 16
          %s265 = scalar_lea.hbm %s0, %s264
          %s267 = sshll.u32 %s260, 4
          %s268 = int_to_ptr.vmem [resolvable:$true] %s267
          %270 = dma.hbm_to_vmem [thread:$0]  %s265, 16, %s268, %s258
        $region36: #{tpu_custom_call.1} parent=31 // pred_fallthru
          _
        // Predicated region
        $region37: #{tpu_custom_call.1} parent=31 // pred_check
          %p271 = pneg %p175
        $region38: #{tpu_custom_call.1} parent=31 // pred_check_branch
          %273 = sbr.rel (%p271) target = $region40
        $region39: #{tpu_custom_call.1} parent=31 // pred_region
          %s274 = sand.u32 %s19, 1
          %s275 = scalar_lea.sflag [#allocation5], %s274
          %s276 = sand.u32 %s165, 1
          %s277 = smul.addr %s276, 12
          %s278 = scalar_lea.vmem [#allocation9], %s277
          %s280 = ssub.s32 192, 192
          %281 = vsyncadd %s275, %s280
          %s282 = smul.addr %s28, 3
          %s283 = smul.addr %s26, 3
          %s284 = sadd.s32 %s282, %s283
          %s285 = smul.addr %s284, 64
          %s286 = scalar_lea.hbm %s5, %s285
          %s288 = sshll.u32 %s278, 4
          %s289 = int_to_ptr.vmem [resolvable:$true] %s288
          %291 = dma.hbm_to_vmem [thread:$0]  %s286, 192, %s289, %s275
        $region40: #{tpu_custom_call.1} parent=31 // pred_fallthru
          _
      $region32: #{tpu_custom_call.1} parent=5 // pred_fallthru
        _
      %p292 = scmp.le.s32.totalorder 1, %s19
      %p293 = scmp.lt.s32.totalorder %s19, 3
      %p294 = pnand %p292, %p293
      %p295 = pneg %p294
      // Predicated region
      $region41: #{tpu_custom_call.1} parent=5 // pred_check
        _
      $region42: #{tpu_custom_call.1} parent=5 // pred_check_branch
        %297 = sbr.rel (%p294) target = $region44
      $region43: #{tpu_custom_call.1} parent=5 // pred_region
        %s298 = ssub.s32 %s19, 1
        %s299 = sand.u32 %s24, 1
        %s300 = scalar_lea.sflag [#allocation5], %s299
        %s301 = sand.u32 %s51, 1
        %s302 = scalar_lea.vmem [#allocation4], %s301
        // Predicated region
        $region45: #{tpu_custom_call.1} parent=43 // pred_check
          %p303 = pneg %p64
        $region46: #{tpu_custom_call.1} parent=43 // pred_check_branch
          %305 = sbr.rel (%p303) target = $region48
        $region47: #{tpu_custom_call.1} parent=43 // pred_region
          %306 = dma.done %s300, 16
        $region48: #{tpu_custom_call.1} parent=43 // pred_fallthru
          _
        // Predicated region
        $region49: #{tpu_custom_call.1} parent=43 // pred_check
          %p307 = pneg %p153
        $region50: #{tpu_custom_call.1} parent=43 // pred_check_branch
          %309 = sbr.rel (%p307) target = $region52
        $region51: #{tpu_custom_call.1} parent=43 // pred_region
          %310 = dma.done [#allocation8], 256
        $region52: #{tpu_custom_call.1} parent=43 // pred_fallthru
          _
        %s311 = sand.u32 %s24, 1
        %s312 = scalar_lea.sflag [#allocation5], %s311
        %s313 = sand.u32 %s168, 1
        %s314 = smul.addr %s313, 12
        %s315 = scalar_lea.vmem [#allocation9], %s314
        // Predicated region
        $region53: #{tpu_custom_call.1} parent=43 // pred_check
          %p316 = pneg %p181
        $region54: #{tpu_custom_call.1} parent=43 // pred_check_branch
          %318 = sbr.rel (%p316) target = $region56
        $region55: #{tpu_custom_call.1} parent=43 // pred_region
          %319 = dma.done %s312, 192
        $region56: #{tpu_custom_call.1} parent=43 // pred_fallthru
          _
        %s320 = sand.u32 %s24, 1
        %s321 = scalar_lea.sflag [#allocation5], %s320
        %s322 = sand.u32 %s51, 1
        %s323 = scalar_lea.vmem [#allocation4], %s322
        %p324 = pneg %p64
        %p325 = pneg %p61
        %p326 = pneg %p85
        %p327 = pneg %p82
        %p328 = pneg %p106
        %p329 = pneg %p103
        %p330 = pneg %p127
        %p331 = pneg %p124
        %p332 = pneg %p153
        %p333 = pneg %p150
        %s334 = sand.u32 %s24, 1
        %s335 = scalar_lea.sflag [#allocation5], %s334
        %s336 = sand.u32 %s168, 1
        %s337 = smul.addr %s336, 12
        %s338 = scalar_lea.vmem [#allocation9], %s337
        %p339 = pneg %p181
        %p340 = pneg %p178
        %p341 = pneg %p211
        %p342 = pneg %p208
        %s343 = sand.u32 %s198, 1
        %s344 = scalar_lea.sflag [#allocation6], %s343
        %s345 = sand.u32 %s198, 1
        %s346 = smul.addr %s345, 24
        %s347 = scalar_lea.vmem [#allocation10], %s346
        %s348 = smul.u32 3, %s31
        %p350 = scmp.eq.s32.totalorder %s31, 0
        // Predicated region
        $region57: #{tpu_custom_call.1} parent=43 // pred_check
          %p351 = pneg %p350
        $region58: #{tpu_custom_call.1} parent=43 // pred_check_branch
          %353 = sbr.rel (%p351) target = $region60
        $region59: #{tpu_custom_call.1} parent=43 // pred_region
          %v354 = vld [vmem:[%s302] sm:$0x1]
          %v355 = vld [vmem:[%s1] sm:$0x3]
          %v357 = vlaneseq
          %v358 = vshrl.u32 %v357, 7
          %v359 = vsub.s32 0, %v358
          %v360 = vrot.slane %v354, %v359
          %v362 = vmul.f32 %v355, %v360
          %vm363 = vcmask 25600
          %v364 = vsel %vm363, %v362, 0.0
          %365 = vadd.xlane.f32.xlu0 %v364
          %v366 = vpop.xlane.xlu0 %365
          %v367 = vmax.f32 %v366, 0.0
          %v368 = vld [vmem:[%s2] sm:$0x3]
          %v369 = vmul.f32 %v368, %v367
          %v370 = vsel %vm363, %v369, 0.0
          %v371 = vrot.slane %v370, 4
          %v372 = vadd.f32 %v370, %v371
          %v373 = vrot.slane %v372, 2
          %v374 = vadd.f32 %v372, %v373
          %v375 = vrot.slane %v374, 1
          %v376 = vadd.f32 %v374, %v375
          %v377 = vld [vmem:[%s3] sm:$0x1]
          %v378 = vadd.f32 %v376, %v377
          %v379 = vmul.f32 %v378, 0.029411765
          %vm380 = vcmask 24576
          %v381 = vsel %vm380, %v379, -inf
          %382 = vmax.xlane.f32.xlu0 %v381
          %v383 = vpop.xlane.xlu0 %382
          %v384 = vsub.f32 %v379, %v383
          %v385 = vmul.f32 %v384, 1.442695
          %v386 = vpow.pop %v385
          %v387 = vsel %vm380, %v386, 0.0
          %388 = vadd.xlane.f32.xlu0 %v387
          %v389 = vpop.xlane.xlu0 %388
          %v390 = vrcp.pop %v389
          %v391 = vmul.f32 %v386, %v390
          %v392 = vld [vmem:[#allocation7] sm:$0xf]
          %v393 = vunpack.c.l.bf16 %v392
          %s395 = vtos %v391
          %v396 = vstv %s395
          %v398 = vmul.f32 %v396, %v393
          %s399 = scalar_lea.vmem [#allocation7], 4
          %v400 = vld [vmem:[%s399] sm:$0xf]
          %v401 = vunpack.c.l.bf16 %v400
          %402 = vrot.lane.b32.xlu0 %v391, 127
          %v403 = vpop.permute.xlu0 %402
          %s404 = vtos %v403
          %v405 = vstv %s404
          %v407 = vmul.f32 %v405, %v401
          %v408 = vadd.f32 %v398, %v407
          %s409 = scalar_lea.vmem [#allocation7], 8
          %v410 = vld [vmem:[%s409] sm:$0xf]
          %v411 = vunpack.c.l.bf16 %v410
          %412 = vrot.lane.b32.xlu0 %v391, 126
          %v413 = vpop.permute.xlu0 %412
          %s414 = vtos %v413
          %v415 = vstv %s414
          %v417 = vmul.f32 %v415, %v411
          %v418 = vadd.f32 %v408, %v417
          %s419 = scalar_lea.vmem [#allocation7], 12
          %v420 = vld [vmem:[%s419] sm:$0xf]
          %v421 = vunpack.c.l.bf16 %v420
          %422 = vrot.lane.b32.xlu0 %v391, 125
          %v423 = vpop.permute.xlu0 %422
          %s424 = vtos %v423
          %v425 = vstv %s424
          %v427 = vmul.f32 %v425, %v421
          %v428 = vadd.f32 %v418, %v427
          %v429 = vpack.c.bf16 %v428, %v428
          %vm430 = vcmask 584704
          %431 = vst.msk [vmem:[#allocation2] sm:$0xf] %vm430, %v429
        $region60: #{tpu_custom_call.1} parent=43 // pred_fallthru
          _
        %v432 = vld [vmem:[%s315] sm:$0xff]
        %v433 = vld [vmem:[%s315 + $0x8] sm:$0xf]
        %434 = vst [vmem:[#allocation3] sm:$0xff] %v432
        %vm435 = vcmask 257024
        %436 = vst.msk [vmem:[#allocation3 + $0x8] sm:$0xf] %vm435, %v433
        %v437 = vld [vmem:[%s315] sm:$0xff]
        %v438 = vld [vmem:[%s315 + $0x8] sm:$0xf]
        %441 = vrot.lane.b32.xlu0 %v437, 127
        %v442 = vpop.permute.xlu0 %441
        %443 = vrot.lane.b32.xlu0 %v438, 127
        %v444 = vpop.permute.xlu0 %443
        %v445 = vrot.slane %v442, 4
        %v446 = vrot.slane %v444, 4
        %vm447 = vcmask 1043456
        %v448 = vsel %vm447, %v445, %v446
        %vm449 = vcmask 1039360
        %v450 = vsel %vm449, %v442, %v448
        %453 = vst [vmem:[#allocation3 + $0xc] sm:$0xff] %v450
        %454 = vst.msk [vmem:[#allocation3 + $0x14] sm:$0xf] %vm435, %v444
        %v455 = vld [vmem:[%s315] sm:$0xff]
        %v456 = vld [vmem:[%s315 + $0x8] sm:$0xf]
        %459 = vrot.lane.b32.xlu0 %v455, 126
        %v460 = vpop.permute.xlu0 %459
        %461 = vrot.lane.b32.xlu0 %v456, 126
        %v462 = vpop.permute.xlu0 %461
        %v463 = vrot.slane %v460, 4
        %v464 = vrot.slane %v462, 4
        %v465 = vsel %vm447, %v463, %v464
        %vm466 = vcmask 1031168
        %v467 = vsel %vm466, %v460, %v465
        %470 = vst [vmem:[#allocation3 + $0x18] sm:$0xff] %v467
        %471 = vst.msk [vmem:[#allocation3 + $0x20] sm:$0xf] %vm435, %v462
        %v472 = vld [vmem:[%s315] sm:$0xff]
        %v473 = vld [vmem:[%s315 + $0x8] sm:$0xf]
        %476 = vrot.lane.b32.xlu0 %v472, 110
        %v477 = vpop.permute.xlu0 %476
        %478 = vrot.lane.b32.xlu0 %v473, 110
        %v479 = vpop.permute.xlu0 %478
        %v480 = vrot.slane %v477, 4
        %v481 = vrot.slane %v479, 4
        %v482 = vsel %vm447, %v480, %v481
        %vm483 = vcmask 900096
        %v484 = vsel %vm483, %v477, %v482
        %487 = vst [vmem:[#allocation3 + $0x24] sm:$0xff] %v484
        %488 = vst.msk [vmem:[#allocation3 + $0x2c] sm:$0xf] %vm435, %v479
        %v489 = vld [vmem:[%s315] sm:$0xff]
        %v490 = vld [vmem:[%s315 + $0x8] sm:$0xf]
        %493 = vrot.lane.b32.xlu0 %v489, 109
        %v494 = vpop.permute.xlu0 %493
        %495 = vrot.lane.b32.xlu0 %v490, 109
        %v496 = vpop.permute.xlu0 %495
        %v497 = vrot.slane %v494, 4
        %v498 = vrot.slane %v496, 4
        %v499 = vsel %vm447, %v497, %v498
        %vm500 = vcmask 891904
        %v501 = vsel %vm500, %v494, %v499
        %504 = vst [vmem:[#allocation3 + $0x30] sm:$0xff] %v501
        %505 = vst.msk [vmem:[#allocation3 + $0x38] sm:$0xf] %vm435, %v496
        %v506 = vld [vmem:[%s315] sm:$0xff]
        %v507 = vld [vmem:[%s315 + $0x8] sm:$0xf]
        %510 = vrot.lane.b32.xlu0 %v506, 108
        %v511 = vpop.permute.xlu0 %510
        %512 = vrot.lane.b32.xlu0 %v507, 108
        %v513 = vpop.permute.xlu0 %512
        %v514 = vrot.slane %v511, 4
        %v515 = vrot.slane %v513, 4
        %v516 = vsel %vm447, %v514, %v515
        %vm517 = vcmask 883712
        %v518 = vsel %vm517, %v511, %v516
        %521 = vst [vmem:[#allocation3 + $0x3c] sm:$0xff] %v518
        %522 = vst.msk [vmem:[#allocation3 + $0x44] sm:$0xf] %vm435, %v513
        %v523 = vld [vmem:[%s315] sm:$0xff]
        %v524 = vld [vmem:[%s315 + $0x8] sm:$0xf]
        %527 = vrot.lane.b32.xlu0 %v523, 92
        %v528 = vpop.permute.xlu0 %527
        %529 = vrot.lane.b32.xlu0 %v524, 92
        %v530 = vpop.permute.xlu0 %529
        %v531 = vrot.slane %v528, 4
        %v532 = vrot.slane %v530, 4
        %v533 = vsel %vm447, %v531, %v532
        %vm534 = vcmask 752640
        %v535 = vsel %vm534, %v528, %v533
        %538 = vst [vmem:[#allocation3 + $0x48] sm:$0xff] %v535
        %539 = vst.msk [vmem:[#allocation3 + $0x50] sm:$0xf] %vm435, %v530
        %v540 = vld [vmem:[%s315] sm:$0xff]
        %v541 = vld [vmem:[%s315 + $0x8] sm:$0xf]
        %544 = vrot.lane.b32.xlu0 %v540, 91
        %v545 = vpop.permute.xlu0 %544
        %546 = vrot.lane.b32.xlu0 %v541, 91
        %v547 = vpop.permute.xlu0 %546
        %v548 = vrot.slane %v545, 4
        %v549 = vrot.slane %v547, 4
        %v550 = vsel %vm447, %v548, %v549
        %vm551 = vcmask 744448
        %v552 = vsel %vm551, %v545, %v550
        %555 = vst [vmem:[#allocation3 + $0x54] sm:$0xff] %v552
        %556 = vst.msk [vmem:[#allocation3 + $0x5c] sm:$0xf] %vm435, %v547
        %v557 = vld [vmem:[%s315] sm:$0xff]
        %v558 = vld [vmem:[%s315 + $0x8] sm:$0xf]
        %561 = vrot.lane.b32.xlu0 %v557, 90
        %v562 = vpop.permute.xlu0 %561
        %563 = vrot.lane.b32.xlu0 %v558, 90
        %v564 = vpop.permute.xlu0 %563
        %v565 = vrot.slane %v562, 4
        %v566 = vrot.slane %v564, 4
        %v567 = vsel %vm447, %v565, %v566
        %vm568 = vcmask 736256
        %v569 = vsel %vm568, %v562, %v567
        %572 = vst [vmem:[#allocation3 + $0x60] sm:$0xff] %v569
        %573 = vst.msk [vmem:[#allocation3 + $0x68] sm:$0xf] %vm435, %v564
        %v574 = vld [vmem:[#allocation2] sm:$0xf]
        %v575 = vld [vmem:[#allocation3] sm:$0xff]
        %v576 = vld [vmem:[#allocation3 + $0x8] sm:$0xf]
        %v577 = vld [vmem:[#allocation3 + $0xc] sm:$0xff]
        %v578 = vld [vmem:[#allocation3 + $0x14] sm:$0xf]
        %v579 = vld [vmem:[#allocation3 + $0x18] sm:$0xff]
        %v580 = vld [vmem:[#allocation3 + $0x20] sm:$0xf]
        %v581 = vld [vmem:[#allocation3 + $0x24] sm:$0xff]
        %v582 = vld [vmem:[#allocation3 + $0x2c] sm:$0xf]
        %v583 = vld [vmem:[#allocation3 + $0x30] sm:$0xff]
        %v584 = vld [vmem:[#allocation3 + $0x38] sm:$0xf]
        %v585 = vld [vmem:[#allocation3 + $0x3c] sm:$0xff]
        %v586 = vld [vmem:[#allocation3 + $0x44] sm:$0xf]
        %v587 = vld [vmem:[#allocation3 + $0x48] sm:$0xff]
        %v588 = vld [vmem:[#allocation3 + $0x50] sm:$0xf]
        %v589 = vld [vmem:[#allocation3 + $0x54] sm:$0xff]
        %v590 = vld [vmem:[#allocation3 + $0x5c] sm:$0xf]
        %v591 = vld [vmem:[#allocation3 + $0x60] sm:$0xff]
        %v592 = vld [vmem:[#allocation3 + $0x68] sm:$0xf]
        %v611 = vunpack.c.l.b16 %v575
        %v612 = vunpack.c.h.b16 %v575
        %v613 = vunpack.c.l.b16 %v576
        %v614 = vunpack.c.l.b16 %v577
        %v615 = vunpack.c.h.b16 %v577
        %v616 = vunpack.c.l.b16 %v578
        %v617 = vunpack.c.l.b16 %v579
        %v618 = vunpack.c.h.b16 %v579
        %v619 = vunpack.c.l.b16 %v580
        %v620 = vunpack.c.l.b16 %v581
        %v621 = vunpack.c.h.b16 %v581
        %v622 = vunpack.c.l.b16 %v582
        %v623 = vunpack.c.l.b16 %v583
        %v624 = vunpack.c.h.b16 %v583
        %v625 = vunpack.c.l.b16 %v584
        %v626 = vunpack.c.l.b16 %v585
        %v627 = vunpack.c.h.b16 %v585
        %v628 = vunpack.c.l.b16 %v586
        %v629 = vunpack.c.l.b16 %v587
        %v630 = vunpack.c.h.b16 %v587
        %v631 = vunpack.c.l.b16 %v588
        %v632 = vunpack.c.l.b16 %v589
        %v633 = vunpack.c.h.b16 %v589
        %v634 = vunpack.c.l.b16 %v590
        %v635 = vunpack.c.l.b16 %v591
        %v636 = vunpack.c.h.b16 %v591
        %v637 = vunpack.c.l.b16 %v592
        %v638 = vpack.c.b16 %v614, %v611
        %v639 = vpack.c.b16 %v615, %v612
        %v640 = vpack.c.b16 %v616, %v613
        %v641 = vpack.c.b16 %v620, %v617
        %v642 = vpack.c.b16 %v621, %v618
        %v643 = vpack.c.b16 %v622, %v619
        %v644 = vpack.c.b16 %v626, %v623
        %v645 = vpack.c.b16 %v627, %v624
        %v646 = vpack.c.b16 %v628, %v625
        %v647 = vpack.c.b16 %v632, %v629
        %v648 = vpack.c.b16 %v633, %v630
        %v649 = vpack.c.b16 %v634, %v631
        %v650 = vpack.c.b16 %v635, %v635
        %v651 = vpack.c.b16 %v636, %v636
        %v652 = vpack.c.b16 %v637, %v637
        %vm665 = vcmask 588800
        %v667 = vsel %vm665, %v574, 0
        %vm669 = vcmask 1043456
        %v671 = vsel %vm669, %v650, 0
        %v674 = vsel %vm669, %v651, 0
        %v677 = vsel %vm669, %v652, 0
        %679 = vmatprep.subr.bf16.mxu0 %v639
        %680 = vmatpush1.bf16.msra.mxu0 %v638
        %681 = vmatprep.subr.bf16.mxu0 %v642
        %682 = vmatpush1.bf16.msra.mxu0 %v641
        %683 = vmatprep.subr.bf16.mxu0 %v645
        %684 = vmatpush1.bf16.msra.mxu0 %v644
        %685 = vmatprep.subr.bf16.mxu0 %v648
        %686 = vmatpush1.bf16.msra.mxu0 %v647
        %687 = vmatprep.subr.bf16.mxu0 %v674
        %688 = vmatpush1.bf16.msra.mxu0 %v671
        %689 = vmatprep.subr.bf16.mxu0 0
        %690 = vmatpush1.bf16.msra.mxu0 0
        %691 = vmatprep.subr.bf16.mxu0 0
        %692 = vmatpush1.bf16.msra.mxu0 0
        %693 = vmatprep.subr.bf16.mxu0 0
        %694 = vmatpush1.bf16.msra.mxu0 0
        %695 = vmatprep.subr.bf16.mxu0 0
        %696 = vmatpush1.bf16.msra.mxu0 0
        %697 = vmatprep.subr.bf16.mxu0 0
        %698 = vmatpush1.bf16.msra.mxu0 0
        %699 = vmatprep.subr.bf16.mxu0 0
        %700 = vmatpush1.bf16.msra.mxu0 0
        %701 = vmatprep.subr.bf16.mxu0 0
        %702 = vmatpush1.bf16.msra.mxu0 0
        %703 = vmatprep.subr.bf16.mxu0 0
        %704 = vmatpush1.bf16.msra.mxu0 0
        %705 = vmatprep.subr.bf16.mxu0 0
        %706 = vmatpush1.bf16.msra.mxu0 0
        %707 = vmatprep.subr.bf16.mxu0 0
        %708 = vmatpush1.bf16.msra.mxu0 0
        %709 = vmatprep.subr.bf16.mxu0 0
        %710 = vmatpush1.bf16.msra.mxu0 0
        %711 = vmatprep.mubr.bf16.mxu0 0
        %712 = vmatmul.mubr.bf16.gmra.mrb[0].mxu0 %v667
        %v713 = vpop.f32.mrb[0].mxu0
        %v714 = vadd.f32 0.0, %v713
        %v715 = vpop.f32.mrb[0].mxu0
        %v716 = vadd.f32 0.0, %v715
        %v717 = vpop.f32.mrb[0].mxu0
        %v718 = vpop.f32.mrb[0].mxu0
        %719 = vdwg.mxu0
        %720 = vmatprep.subr.bf16.mxu0 0
        %721 = vmatpush1.bf16.msra.mxu0 %v640
        %722 = vmatprep.subr.bf16.mxu0 0
        %723 = vmatpush1.bf16.msra.mxu0 %v643
        %724 = vmatprep.subr.bf16.mxu0 0
        %725 = vmatpush1.bf16.msra.mxu0 %v646
        %726 = vmatprep.subr.bf16.mxu0 0
        %727 = vmatpush1.bf16.msra.mxu0 %v649
        %728 = vmatprep.subr.bf16.mxu0 0
        %729 = vmatpush1.bf16.msra.mxu0 %v677
        %730 = vmatprep.subr.bf16.mxu0 0
        %731 = vmatpush1.bf16.msra.mxu0 0
        %732 = vmatprep.subr.bf16.mxu0 0
        %733 = vmatpush1.bf16.msra.mxu0 0
        %734 = vmatprep.subr.bf16.mxu0 0
        %735 = vmatpush1.bf16.msra.mxu0 0
        %736 = vmatprep.subr.bf16.mxu0 0
        %737 = vmatpush1.bf16.msra.mxu0 0
        %738 = vmatprep.subr.bf16.mxu0 0
        %739 = vmatpush1.bf16.msra.mxu0 0
        %740 = vmatprep.subr.bf16.mxu0 0
        %741 = vmatpush1.bf16.msra.mxu0 0
        %742 = vmatprep.subr.bf16.mxu0 0
        %743 = vmatpush1.bf16.msra.mxu0 0
        %744 = vmatprep.subr.bf16.mxu0 0
        %745 = vmatpush1.bf16.msra.mxu0 0
        %746 = vmatprep.subr.bf16.mxu0 0
        %747 = vmatpush1.bf16.msra.mxu0 0
        %748 = vmatprep.subr.bf16.mxu0 0
        %749 = vmatpush1.bf16.msra.mxu0 0
        %750 = vmatprep.subr.bf16.mxu0 0
        %751 = vmatpush1.bf16.msra.mxu0 0
        %752 = vmatprep.mubr.bf16.mxu0 0
        %753 = vmatmul.mubr.bf16.gmra.mrb[0].mxu0 %v667
        %v754 = vpop.f32.mrb[0].mxu0
        %v755 = vadd.f32 0.0, %v754
        %v756 = vpop.f32.mrb[0].mxu0
        %v757 = vpop.f32.mrb[0].mxu0
        %v758 = vpop.f32.mrb[0].mxu0
        %759 = vdwg.mxu0
        %760 = vst [vmem:[%s347] sm:$0xff] %v714
        %761 = vst [vmem:[%s347 + $0x8] sm:$0xff] %v716
        %vm762 = vcmask 261120
        %763 = vst.msk [vmem:[%s347 + $0x10] sm:$0xff] %vm762, %v755
        %s764 = sand.u32 %s198, 1
        %s765 = scalar_lea.sflag [#allocation6], %s764
        %s766 = sand.u32 %s198, 1
        %s767 = smul.addr %s766, 24
        %s768 = scalar_lea.vmem [#allocation10], %s767
        // Predicated region
        $region61: #{tpu_custom_call.1} parent=43 // pred_check
          %p769 = pneg %p208
        $region62: #{tpu_custom_call.1} parent=43 // pred_check_branch
          %771 = sbr.rel (%p769) target = $region64
        $region63: #{tpu_custom_call.1} parent=43 // pred_region
          %s772 = smul.u32 3, %s31
          %s774 = ssub.s32 384, 384
          %775 = vsyncadd %s765, %s774
          %s776 = smul.addr %s30, 3
          %s777 = sadd.s32 %s772, %s776
          %s778 = smul.addr %s29, 3
          %s779 = sadd.s32 %s777, %s778
          %s780 = smul.addr %s779, 128
          %s781 = scalar_lea.hbm %s6, %s780
          %s783 = sshll.u32 %s768, 4
          %s784 = int_to_ptr.vmem [resolvable:$true] %s783
          %786 = dma.vmem_to_hbm [thread:$0]  %s784, 384, %s781, %s765
        $region64: #{tpu_custom_call.1} parent=43 // pred_fallthru
          _
      $region44: #{tpu_custom_call.1} parent=5 // pred_fallthru
        _
      %p787 = scmp.le.s32.totalorder 2, %s19
      // Predicated region
      $region65: #{tpu_custom_call.1} parent=5 // pred_check
        %p788 = pneg %p787
      $region66: #{tpu_custom_call.1} parent=5 // pred_check_branch
        %790 = sbr.rel (%p788) target = $region68
      $region67: #{tpu_custom_call.1} parent=5 // pred_region
        %s791 = ssub.s32 %s19, 2
        // Predicated region
        $region69: #{tpu_custom_call.1} parent=67 // pred_check
          %p792 = pneg %p214
        $region70: #{tpu_custom_call.1} parent=67 // pred_check_branch
          %794 = sbr.rel (%p792) target = $region72
        $region71: #{tpu_custom_call.1} parent=67 // pred_region
          %s795 = sand.u32 %s199, 1
          %s796 = scalar_lea.sflag [#allocation6], %s795
          %s797 = sand.u32 %s199, 1
          %s798 = smul.addr %s797, 24
          %s799 = scalar_lea.vmem [#allocation10], %s798
          %800 = dma.done %s796, 384
        $region72: #{tpu_custom_call.1} parent=67 // pred_fallthru
          _
      $region68: #{tpu_custom_call.1} parent=5 // pred_fallthru
        _
    $region6: #{tpu_custom_call.1} parent=1 // loop_footer
      %s23 = sadd.s32 1, %s19
    $region7: #{tpu_custom_call.1} parent=1 // loop_footer_branch
      %18 = sbr.rel target = $region3
    $region8: #{tpu_custom_call.1} parent=1 // loop_exit
      _
    %801 = vsyncpa [#allocation5], 1
    %s802 = scalar_lea.sflag [#allocation5], 1
    %803 = vsyncpa %s802, 1
    %804 = vsyncpa [#allocation8], 1
    %805 = vsyncpa [#allocation6], 1
    %s806 = scalar_lea.sflag [#allocation6], 1
    %807 = vsyncpa %s806, 1

</llo_original>
